<compile_context>
chip_gen: v5e
topology: v5e:2x2
jax: 0.10.0
libtpu: 0.0.40
codegen_flags: <defaults>
</compile_context>

<pallas_src>
import jax
import jax.numpy as jnp
from jax.experimental import pallas as pl
from jax.experimental.pallas import tpu as pltpu


# --------------------------------------------------------------------------------------
# Pass 1: conv (single MXU matmul per tile) + per-tile BN partial statistics (stats only)
# --------------------------------------------------------------------------------------
def _conv_stats_kernel(w_ref, p_ref, sum_ref, sq_ref):
    # w_ref  : (Cout, 9*Cin)   bf16  im2col weight (matmul LHS), VMEM-resident constant
    # p_ref  : (1, 9*Cin, Tp)  bf16  im2col patch tile (matmul RHS), lane-dense (Tp%128==0)
    # sum_ref: (1, 1, Cout, 1) f32   per-tile per-channel sum
    # sq_ref : (1, 1, Cout, 1) f32   per-tile per-channel sum of squares
    conv = jnp.dot(w_ref[...], p_ref[0], preferred_element_type=jnp.float32)  # (Cout, Tp)
    # NOTE: conv bias intentionally omitted -- training-mode BN subtracts the batch mean
    # right afterwards, so a per-channel constant bias cancels exactly.
    sum_ref[0, 0] = jnp.sum(conv, axis=1, keepdims=True)            # (Cout, 1)
    sq_ref[0, 0] = jnp.sum(conv * conv, axis=1, keepdims=True)      # (Cout, 1)


# --------------------------------------------------------------------------------------
# Pass 2: recompute conv + fused BatchNorm affine (pre-folded scale/shift) + ReLU
# --------------------------------------------------------------------------------------
def _conv_bn_relu_kernel(w_ref, p_ref, scale_ref, shift_ref, out_ref):
    # w_ref    : (Cout, 9*Cin)  bf16
    # p_ref    : (1, 9*Cin, Tp) bf16
    # scale_ref: (Cout, 1)      f32  (= gamma * rsqrt(var + eps))
    # shift_ref: (Cout, 1)      f32  (= beta - mean * scale)
    # out_ref  : (1, Cout, Tp)  f32  lane-dense, already NCHW(-flattened) order
    conv = jnp.dot(w_ref[...], p_ref[0], preferred_element_type=jnp.float32)  # (Cout, Tp)
    z = jnp.maximum(conv * scale_ref[...] + shift_ref[...], 0.0)
    out_ref[0] = z.astype(out_ref.dtype)


def _pick_pixel_tile(n_pix, kc, cout, budget_bytes=8 * 1024 * 1024):
    """Largest pixel tile (a multiple-of-128 divisor of n_pix, or n_pix itself) whose
    double-buffered per-step working set fits a VMEM budget safe on v5e/v6e/v7x."""
    cands = sorted({n_pix} | {d for d in range(128, n_pix, 128) if n_pix % d == 0},
                   reverse=True)
    for t in cands:
        # 2x (pipelined) bf16 patch block + 2x f32 conv/out block + resident weight.
        working = 2 * t * kc * 2 + 2 * cout * t * 4 + cout * kc * 2
        if working <= budget_bytes:
            return t
    return cands[-1]


def conv_block_forward(x_nchw, weight_oihw, bias, gamma, beta, *, eps=1e-5):
    """Fused ConvBlock forward. Input/output are NCHW (PyTorch convention)."""
    B, Cin, H, W = x_nchw.shape
    Cout = weight_oihw.shape[0]
    KC = 9 * Cin
    P = H * W
    del bias  # cancelled exactly by training-mode BatchNorm (see kernel note)

    # ---- wrapper layout plumbing (tiny, one-time XLA) -----------------------------------
    # im2col so both kernels see only lane-dense blocks:
    #   patches[b, (kh*3+kw)*Cin + c, h*W + w] = x_pad[b, c, h+kh, w+kw]
    # TODO(synk): for large Cin the 9x patch materialization stops paying for itself;
    # above that crossover switch to a halo-slab DMA + a single stored bf16 intermediate.
    x_pad = jnp.pad(x_nchw, ((0, 0), (0, 0), (1, 1), (1, 1))).astype(jnp.bfloat16)
    taps = [x_pad[:, :, kh:kh + H, kw:kw + W] for kh in range(3) for kw in range(3)]
    patches = jnp.stack(taps, axis=1).reshape(B, KC, P)               # (B, 9*Cin, H*W)
    # weight as matmul LHS, same (kh, kw, cin) contraction ordering:
    w_lhs = jnp.transpose(weight_oihw, (0, 2, 3, 1)).reshape(Cout, KC).astype(jnp.bfloat16)

    # ---- tiling --------------------------------------------------------------------------
    tile_p = _pick_pixel_tile(P, KC, Cout)
    if B * (P // tile_p) < 2 and tile_p % 256 == 0:
        tile_p //= 2          # v7x: keep >= 2 grid steps so both TensorCores get work
    n_t = P // tile_p
    grid = (B, n_t)

    cparams = pltpu.CompilerParams(
        dimension_semantics=("parallel", "parallel"),
        vmem_limit_bytes=32 * 1024 * 1024)

    flops = 2 * B * P * KC * Cout
    p_spec = pl.BlockSpec((1, KC, tile_p), lambda b, t: (b, 0, t))
    w_spec = pl.BlockSpec((Cout, KC), lambda b, t: (0, 0))

    # ---- pass 1: conv + per-tile BN partial statistics (no activation written) -----------
    sums, sqs = pl.pallas_call(
        _conv_stats_kernel,
        out_shape=(jax.ShapeDtypeStruct((B, n_t, Cout, 1), jnp.float32),
                   jax.ShapeDtypeStruct((B, n_t, Cout, 1), jnp.float32)),
        grid_spec=pltpu.PrefetchScalarGridSpec(
            num_scalar_prefetch=0, grid=grid,
            in_specs=[w_spec, p_spec],
            out_specs=[pl.BlockSpec((1, 1, Cout, 1), lambda b, t: (b, t, 0, 0)),
                       pl.BlockSpec((1, 1, Cout, 1), lambda b, t: (b, t, 0, 0))]),
        compiler_params=cparams,
        cost_estimate=pl.CostEstimate(
            flops=flops, transcendentals=0,
            bytes_accessed=B * KC * P * 2 + Cout * KC * 2 + 2 * B * n_t * Cout * 4),
    )(w_lhs, patches)

    # ---- tiny cross-tile reduction + BN affine folding (plain XLA, negligible) -----------
    n = jnp.float32(B * P)
    s = jnp.sum(sums, axis=(0, 1))[:, 0]                              # (Cout,)
    q = jnp.sum(sqs, axis=(0, 1))[:, 0]                               # (Cout,)
    mean = s / n
    var = jnp.maximum(q / n - mean * mean, 0.0)
    # TODO(synk): E[x^2]-E[x]^2 cancels badly when |mean| >> std; switch to a Welford-style
    # cross-tile combine if that regime shows up on real (non-zero-mean) data.
    inv_std = jax.lax.rsqrt(var + eps)
    g32 = gamma.astype(jnp.float32)
    scale = (g32 * inv_std).reshape(Cout, 1)
    shift = (beta.astype(jnp.float32) - mean * g32 * inv_std).reshape(Cout, 1)

    # ---- pass 2: recompute conv + fused BN + ReLU, lane-dense channel-major output -------
    out = pl.pallas_call(
        _conv_bn_relu_kernel,
        out_shape=jax.ShapeDtypeStruct((B, Cout, P), jnp.float32),
        grid_spec=pltpu.PrefetchScalarGridSpec(
            num_scalar_prefetch=0, grid=grid,
            in_specs=[w_spec, p_spec,
                      pl.BlockSpec((Cout, 1), lambda b, t: (0, 0)),
                      pl.BlockSpec((Cout, 1), lambda b, t: (0, 0))],
            out_specs=pl.BlockSpec((1, Cout, tile_p), lambda b, t: (b, 0, t))),
        compiler_params=cparams,
        cost_estimate=pl.CostEstimate(
            flops=flops, transcendentals=0,
            bytes_accessed=B * KC * P * 2 + Cout * KC * 2
                           + 2 * Cout * 4 * 2 + B * Cout * P * 4),
    )(w_lhs, patches, scale, shift)

    # (B, Cout, H*W) -> (B, Cout, H, W): pure metadata reshape, already NCHW.
    return out.reshape(B, Cout, H, W)


def _reference(x_nchw, weight_oihw, bias, gamma, beta, compute_dtype=jnp.float32):
    """Pure-JAX reference (Conv2d + training-mode BN + ReLU), NCHW."""
    y = jax.lax.conv_general_dilated(
        x_nchw.astype(compute_dtype), weight_oihw.astype(compute_dtype),
        window_strides=(1, 1), padding=((1, 1), (1, 1)),
        dimension_numbers=("NCHW", "OIHW", "NCHW"),
        preferred_element_type=jnp.float32)
    y = y + bias.reshape(1, -1, 1, 1).astype(jnp.float32)
    mean = jnp.mean(y, axis=(0, 2, 3), keepdims=True)
    var = jnp.mean((y - mean) ** 2, axis=(0, 2, 3), keepdims=True)
    y = (y - mean) * jax.lax.rsqrt(var + 1e-5)
    y = y * gamma.reshape(1, -1, 1, 1) + beta.reshape(1, -1, 1, 1)
    return jnp.maximum(y, 0.0)


if __name__ == "__main__":
    # Small, deterministic example consistent with ConvBlock(in_feature=4, out_feature=8).
    key = jax.random.PRNGKey(0)
    kx, kw, kb = jax.random.split(key, 3)

    B, Cin, H, W = 2, 4, 16, 16
    Cout = 8

    x = jax.random.normal(kx, (B, Cin, H, W), dtype=jnp.float32)
    fan_in = Cin * 3 * 3
    bound = 1.0 / (fan_in ** 0.5)
    weight = jax.random.uniform(kw, (Cout, Cin, 3, 3), jnp.float32, -bound, bound)
    bias = jax.random.uniform(kb, (Cout,), jnp.float32, -bound, bound)
    gamma = jnp.ones((Cout,), jnp.float32)   # BatchNorm2d default init
    beta = jnp.zeros((Cout,), jnp.float32)

    fwd = jax.jit(conv_block_forward)
    out = jax.block_until_ready(fwd(x, weight, bias, gamma, beta))
    assert out.shape == (B, Cout, H, W)

    # The kernel uses bf16 MXU operands with f32 accumulation: tight check vs a reference
    # that also casts the conv operands to bf16, loose check vs the exact-f32 reference.
    ref_bf16 = _reference(x, weight, bias, gamma, beta, jnp.bfloat16)
    ref_f32 = _reference(x, weight, bias, gamma, beta, jnp.float32)
    assert jnp.allclose(out, ref_bf16, atol=2e-3, rtol=2e-3)
    assert jnp.allclose(out, ref_f32, atol=2e-2, rtol=2e-2)

    print("KERNEL_OK")
</pallas_src>

<mosaic_0001>
module attributes {stable_mosaic.version = 11 : i64} {
  func.func @_conv_stats_kernel(%arg0: i32, %arg1: i32, %arg2: memref<8x36xbf16, #tpu.memory_space<vmem>>, %arg3: memref<1x36x256xbf16, #tpu.memory_space<vmem>>, %arg4: memref<1x1x8x1xf32, #tpu.memory_space<vmem>>, %arg5: memref<1x1x8x1xf32, #tpu.memory_space<vmem>>) attributes {dimension_semantics = [#tpu.dimension_semantics<parallel>, #tpu.dimension_semantics<parallel>], iteration_bounds = array<i64: 2, 1>, scalar_prefetch = 0 : i64, scratch_operands = 0 : i64, tpu.core_type = #tpu.core_type<tc>, window_params = [{pipeline_mode = #tpu.pipeline_mode<synchronous>, transform_indices = @transform_0, window_bounds = array<i64: 8, 36>}, {transform_indices = @transform_1, window_bounds = array<i64: 1, 36, 256>}, {transform_indices = @transform_2, window_bounds = array<i64: 1, 1, 8, 1>}, {transform_indices = @transform_3, window_bounds = array<i64: 1, 1, 8, 1>}]} {
    %c0 = arith.constant 0 : index
    %c0_0 = arith.constant 0 : index
    %0 = vector.load %arg2[%c0, %c0_0] : memref<8x36xbf16, #tpu.memory_space<vmem>>, vector<8x36xbf16>
    %c0_1 = arith.constant 0 : index
    %c0_2 = arith.constant 0 : index
    %c0_3 = arith.constant 0 : index
    %1 = vector.load %arg3[%c0_1, %c0_2, %c0_3] : memref<1x36x256xbf16, #tpu.memory_space<vmem>>, vector<1x36x256xbf16>
    %2 = vector.shape_cast %1 : vector<1x36x256xbf16> to vector<36x256xbf16>
    %cst = arith.constant dense<0.000000e+00> : vector<8x256xf32>
    %3 = tpu.matmul %0, %2, %cst {dimension_numbers = #tpu.dot_dimension_numbers<[1], [0], [0], [1], [0, 0, 1, 1], [], []>} : vector<8x36xbf16>, vector<36x256xbf16>, vector<8x256xf32> -> vector<8x256xf32>
    %cst_4 = arith.constant dense<0.000000e+00> : vector<8xf32>
    %4 = vector.multi_reduction <add>, %3, %cst_4 [1] : vector<8x256xf32> to vector<8xf32>
    %5 = vector.shape_cast %4 : vector<8xf32> to vector<8x1xf32>
    %c0_5 = arith.constant 0 : index
    %c0_6 = arith.constant 0 : index
    %c0_7 = arith.constant 0 : index
    %c0_8 = arith.constant 0 : index
    %6 = vector.load %arg4[%c0_5, %c0_6, %c0_7, %c0_8] : memref<1x1x8x1xf32, #tpu.memory_space<vmem>>, vector<1x1x8x1xf32>
    %7 = vector.shape_cast %6 : vector<1x1x8x1xf32> to vector<8x1xf32>
    %8 = vector.shape_cast %5 : vector<8x1xf32> to vector<1x1x8x1xf32>
    tpu.vector_store %arg4[%c0_5, %c0_6, %c0_7, %c0_8], %8 {strides = array<i32>} : memref<1x1x8x1xf32, #tpu.memory_space<vmem>>, vector<1x1x8x1xf32>,
    %9 = arith.mulf %3, %3 : vector<8x256xf32>
    %cst_9 = arith.constant dense<0.000000e+00> : vector<8xf32>
    %10 = vector.multi_reduction <add>, %9, %cst_9 [1] : vector<8x256xf32> to vector<8xf32>
    %11 = vector.shape_cast %10 : vector<8xf32> to vector<8x1xf32>
    %c0_10 = arith.constant 0 : index
    %c0_11 = arith.constant 0 : index
    %c0_12 = arith.constant 0 : index
    %c0_13 = arith.constant 0 : index
    %12 = vector.load %arg5[%c0_10, %c0_11, %c0_12, %c0_13] : memref<1x1x8x1xf32, #tpu.memory_space<vmem>>, vector<1x1x8x1xf32>
    %13 = vector.shape_cast %12 : vector<1x1x8x1xf32> to vector<8x1xf32>
    %14 = vector.shape_cast %11 : vector<8x1xf32> to vector<1x1x8x1xf32>
    tpu.vector_store %arg5[%c0_10, %c0_11, %c0_12, %c0_13], %14 {strides = array<i32>} : memref<1x1x8x1xf32, #tpu.memory_space<vmem>>, vector<1x1x8x1xf32>,
    return
  }
  func.func @transform_0(%arg0: i32, %arg1: i32) -> (i32, i32) {
    %c0_i32 = arith.constant 0 : i32
    %c0_i32_0 = arith.constant 0 : i32
    %c0_i32_1 = arith.constant 0 : i32
    return %c0_i32, %c0_i32_0 : i32, i32
  }
  func.func @transform_1(%arg0: i32, %arg1: i32) -> (i32, i32, i32) {
    %c0_i32 = arith.constant 0 : i32
    %c0_i32_0 = arith.constant 0 : i32
    return %arg0, %c0_i32, %arg1 : i32, i32, i32
  }
  func.func @transform_2(%arg0: i32, %arg1: i32) -> (i32, i32, i32, i32) {
    %c0_i32 = arith.constant 0 : i32
    %c0_i32_0 = arith.constant 0 : i32
    %c0_i32_1 = arith.constant 0 : i32
    return %arg0, %arg1, %c0_i32, %c0_i32_0 : i32, i32, i32, i32
  }
  func.func @transform_3(%arg0: i32, %arg1: i32) -> (i32, i32, i32, i32) {
    %c0_i32 = arith.constant 0 : i32
    %c0_i32_0 = arith.constant 0 : i32
    %c0_i32_1 = arith.constant 0 : i32
    return %arg0, %arg1, %c0_i32, %c0_i32_0 : i32, i32, i32, i32
  }
}

module attributes {stable_mosaic.version = 11 : i64} {
  func.func @_conv_bn_relu_kernel(%arg0: i32, %arg1: i32, %arg2: memref<8x36xbf16, #tpu.memory_space<vmem>>, %arg3: memref<1x36x256xbf16, #tpu.memory_space<vmem>>, %arg4: memref<8x1xf32, #tpu.memory_space<vmem>>, %arg5: memref<8x1xf32, #tpu.memory_space<vmem>>, %arg6: memref<1x8x256xf32, #tpu.memory_space<vmem>>) attributes {dimension_semantics = [#tpu.dimension_semantics<parallel>, #tpu.dimension_semantics<parallel>], iteration_bounds = array<i64: 2, 1>, scalar_prefetch = 0 : i64, scratch_operands = 0 : i64, tpu.core_type = #tpu.core_type<tc>, window_params = [{pipeline_mode = #tpu.pipeline_mode<synchronous>, transform_indices = @transform_0, window_bounds = array<i64: 8, 36>}, {transform_indices = @transform_1, window_bounds = array<i64: 1, 36, 256>}, {pipeline_mode = #tpu.pipeline_mode<synchronous>, transform_indices = @transform_2, window_bounds = array<i64: 8, 1>}, {pipeline_mode = #tpu.pipeline_mode<synchronous>, transform_indices = @transform_3, window_bounds = array<i64: 8, 1>}, {transform_indices = @transform_4, window_bounds = array<i64: 1, 8, 256>}]} {
    %c0 = arith.constant 0 : index
    %c0_0 = arith.constant 0 : index
    %0 = vector.load %arg2[%c0, %c0_0] : memref<8x36xbf16, #tpu.memory_space<vmem>>, vector<8x36xbf16>
    %c0_1 = arith.constant 0 : index
    %c0_2 = arith.constant 0 : index
    %c0_3 = arith.constant 0 : index
    %1 = vector.load %arg3[%c0_1, %c0_2, %c0_3] : memref<1x36x256xbf16, #tpu.memory_space<vmem>>, vector<1x36x256xbf16>
    %2 = vector.shape_cast %1 : vector<1x36x256xbf16> to vector<36x256xbf16>
    %cst = arith.constant dense<0.000000e+00> : vector<8x256xf32>
    %3 = tpu.matmul %0, %2, %cst {dimension_numbers = #tpu.dot_dimension_numbers<[1], [0], [0], [1], [0, 0, 1, 1], [], []>} : vector<8x36xbf16>, vector<36x256xbf16>, vector<8x256xf32> -> vector<8x256xf32>
    %c0_4 = arith.constant 0 : index
    %c0_5 = arith.constant 0 : index
    %4 = vector.load %arg4[%c0_4, %c0_5] : memref<8x1xf32, #tpu.memory_space<vmem>>, vector<8x1xf32>
    %5 = vector.broadcast %4 : vector<8x1xf32> to vector<8x256xf32>
    %6 = arith.mulf %3, %5 : vector<8x256xf32>
    %c0_6 = arith.constant 0 : index
    %c0_7 = arith.constant 0 : index
    %7 = vector.load %arg5[%c0_6, %c0_7] : memref<8x1xf32, #tpu.memory_space<vmem>>, vector<8x1xf32>
    %8 = vector.broadcast %7 : vector<8x1xf32> to vector<8x256xf32>
    %9 = arith.addf %6, %8 : vector<8x256xf32>
    %cst_8 = arith.constant 0.000000e+00 : f32
    %10 = vector.broadcast %cst_8 : f32 to vector<8x256xf32>
    %11 = arith.maximumf %9, %10 : vector<8x256xf32>
    %c0_9 = arith.constant 0 : index
    %c0_10 = arith.constant 0 : index
    %c0_11 = arith.constant 0 : index
    %12 = vector.load %arg6[%c0_9, %c0_10, %c0_11] : memref<1x8x256xf32, #tpu.memory_space<vmem>>, vector<1x8x256xf32>
    %13 = vector.shape_cast %12 : vector<1x8x256xf32> to vector<8x256xf32>
    %14 = vector.shape_cast %11 : vector<8x256xf32> to vector<1x8x256xf32>
    tpu.vector_store %arg6[%c0_9, %c0_10, %c0_11], %14 {strides = array<i32>} : memref<1x8x256xf32, #tpu.memory_space<vmem>>, vector<1x8x256xf32>,
    return
  }
  func.func @transform_0(%arg0: i32, %arg1: i32) -> (i32, i32) {
    %c0_i32 = arith.constant 0 : i32
    %c0_i32_0 = arith.constant 0 : i32
    %c0_i32_1 = arith.constant 0 : i32
    return %c0_i32, %c0_i32_0 : i32, i32
  }
  func.func @transform_1(%arg0: i32, %arg1: i32) -> (i32, i32, i32) {
    %c0_i32 = arith.constant 0 : i32
    %c0_i32_0 = arith.constant 0 : i32
    return %arg0, %c0_i32, %arg1 : i32, i32, i32
  }
  func.func @transform_2(%arg0: i32, %arg1: i32) -> (i32, i32) {
    %c0_i32 = arith.constant 0 : i32
    %c0_i32_0 = arith.constant 0 : i32
    %c0_i32_1 = arith.constant 0 : i32
    return %c0_i32, %c0_i32_0 : i32, i32
  }
  func.func @transform_3(%arg0: i32, %arg1: i32) -> (i32, i32) {
    %c0_i32 = arith.constant 0 : i32
    %c0_i32_0 = arith.constant 0 : i32
    %c0_i32_1 = arith.constant 0 : i32
    return %c0_i32, %c0_i32_0 : i32, i32
  }
  func.func @transform_4(%arg0: i32, %arg1: i32) -> (i32, i32, i32) {
    %c0_i32 = arith.constant 0 : i32
    %c0_i32_0 = arith.constant 0 : i32
    return %arg0, %c0_i32, %arg1 : i32, i32, i32
  }
}

</mosaic_0001>

<llo_original>
// kernel: conv_block_forward.2
$region0: #{conv_block_forward.2}
  #allocation0 [shape = 'u32[]', space=smem, size = 0x4, offset = 0x4, fixed_abs, tag = 'smem constant byte address 0x4 - core index']
  #allocation1 [shape = 'u32[72,128]{1,0:T(1,128)}', space=vmem, size = 0x9000, scoped, tag = 'internal scratch']
  %s0 = inlined_call_operand.vmem [shape: bf16[8,36], index: 0, kind: input, shape index: {}]
  %s1 = inlined_call_operand.vmem [shape: bf16[2,36,256], index: 1, kind: input, shape index: {}]
  %s2 = inlined_call_operand.vmem [shape: f32[2,1,8,1], index: 2, kind: output, shape index: {0}]
  %s3 = inlined_call_operand.vmem [shape: f32[2,1,8,1], index: 3, kind: output, shape index: {1}]
  %4 = xla_tuple %s2, %s3
  %s5 = sld [smem:[#allocation0]]
  $region49: #{conv_block_forward.2} parent=0
    _
  %s7 = ssub.s32 1, %s5
  %s8 = scalar_select 0, %s7, %s5
  loop: start=0, step=1, limit=4
  $region2: #{conv_block_forward.2} parent=0 // loop_pre_header
    _
  $region3: #{conv_block_forward.2} parent=0 // loop_header
    %s10 = sphi 0, %s14
    %p11 = scmp.ge.s32.totalorder %s10, 4
    %s17 = sphi 0, %s29
    %s18 = sphi 0, %s25
    %s19 = sphi 0, %s17
    %s20 = sphi 0, %s18
    %s21 = sphi 0, %s19
    %s22 = sphi 0, %s20
    %s30 = sphi 0, %s30
    %s32 = sphi 0, %s30
    %s33 = sphi 0, %s32
    %s47 = sphi 0, %s33
    %s55 = sphi 0, %s57
    %s58 = sphi 0, %s55
    %s59 = sphi 0, %s58
    %s75 = sphi 0, %s59
    %s83 = sphi 0, %s85
    %s86 = sphi 0, %s83
    %s87 = sphi 0, %s86
    %s103 = sphi 0, %s87
    %s111 = sphi 0, %s113
    %s114 = sphi 0, %s111
    %s115 = sphi 0, %s114
    %s131 = sphi 0, %s115
  $region4: #{conv_block_forward.2} parent=0 // loop_header_branch
    %13 = sbr.rel (%p11) target = $region8
  $region5: #{conv_block_forward.2} parent=0 // loop_body
    %s15 = ssub.s32 %s10, 1
    %s16 = ssub.s32 %s10, 2
    %s23 = sadd.s32 1, %s18
    %p24 = scmp.ge.s32.totalorder %s23, 1
    %s25 = scalar_select %p24, 0, %s23
    %s26 = sadd.s32 1, %s17
    %s27 = scalar_select %p24, %s26, %s17
    %p28 = scmp.ge.s32.totalorder %s27, 2
    %s29 = scalar_select %p28, 0, %s27
    %s31 = sadd.s32 %s30, 1
    %p34 = scmp.eq.s32.totalorder %s10, 1
    %p35 = scmp.ne.s32.totalorder %s30, %s32
    %p36 = scmp.eq.s32.totalorder %s10, 0
    %p37 = por %p35, %p36
    %p38 = scmp.ne.s32.totalorder %s30, %s32
    %p39 = scmp.eq.s32.totalorder %s15, 1
    %p40 = por %p38, %p39
    %p41 = scmp.ne.s32.totalorder %s32, %s33
    %p42 = scmp.eq.s32.totalorder %s15, 0
    %p43 = por %p41, %p42
    %p44 = scmp.ne.s32.totalorder %s32, %s33
    %p45 = scmp.eq.s32.totalorder %s16, 1
    %p46 = por %p44, %p45
    %p48 = scmp.ne.s32.totalorder %s33, %s47
    %p49 = scmp.eq.s32.totalorder %s16, 0
    %p50 = por %p48, %p49
    %s51 = ssub.s32 %s17, %s29
    %s52 = ssub.s32 %s18, %s25
    %s53 = sor.u32 %s51, %s52
    %p54 = scmp.eq.s32.totalorder %s53, 0
    %s56 = sadd.s32 %s55, 1
    %s57 = scalar_select %p54, %s55, %s56
    %p60 = pneg %p54
    %p61 = scmp.eq.s32.totalorder %s10, 1
    %p62 = por %p60, %p61
    %p63 = scmp.ne.s32.totalorder %s55, %s58
    %p64 = scmp.eq.s32.totalorder %s10, 0
    %p65 = por %p63, %p64
    %p66 = scmp.ne.s32.totalorder %s55, %s58
    %p67 = scmp.eq.s32.totalorder %s15, 1
    %p68 = por %p66, %p67
    %p69 = scmp.ne.s32.totalorder %s58, %s59
    %p70 = scmp.eq.s32.totalorder %s15, 0
    %p71 = por %p69, %p70
    %p72 = scmp.ne.s32.totalorder %s58, %s59
    %p73 = scmp.eq.s32.totalorder %s16, 1
    %p74 = por %p72, %p73
    %p76 = scmp.ne.s32.totalorder %s59, %s75
    %p77 = scmp.eq.s32.totalorder %s16, 0
    %p78 = por %p76, %p77
    %s79 = ssub.s32 %s17, %s29
    %s80 = ssub.s32 %s18, %s25
    %s81 = sor.u32 %s79, %s80
    %p82 = scmp.eq.s32.totalorder %s81, 0
    %s84 = sadd.s32 %s83, 1
    %s85 = scalar_select %p82, %s83, %s84
    %p88 = pneg %p82
    %p89 = scmp.eq.s32.totalorder %s10, 1
    %p90 = por %p88, %p89
    %p91 = scmp.ne.s32.totalorder %s83, %s86
    %p92 = scmp.eq.s32.totalorder %s10, 0
    %p93 = por %p91, %p92
    %p94 = scmp.ne.s32.totalorder %s83, %s86
    %p95 = scmp.eq.s32.totalorder %s15, 1
    %p96 = por %p94, %p95
    %p97 = scmp.ne.s32.totalorder %s86, %s87
    %p98 = scmp.eq.s32.totalorder %s15, 0
    %p99 = por %p97, %p98
    %p100 = scmp.ne.s32.totalorder %s86, %s87
    %p101 = scmp.eq.s32.totalorder %s16, 1
    %p102 = por %p100, %p101
    %p104 = scmp.ne.s32.totalorder %s87, %s103
    %p105 = scmp.eq.s32.totalorder %s16, 0
    %p106 = por %p104, %p105
    %s107 = ssub.s32 %s17, %s29
    %s108 = ssub.s32 %s18, %s25
    %s109 = sor.u32 %s107, %s108
    %p110 = scmp.eq.s32.totalorder %s109, 0
    %s112 = sadd.s32 %s111, 1
    %s113 = scalar_select %p110, %s111, %s112
    %p116 = pneg %p110
    %p117 = scmp.eq.s32.totalorder %s10, 1
    %p118 = por %p116, %p117
    %p119 = scmp.ne.s32.totalorder %s111, %s114
    %p120 = scmp.eq.s32.totalorder %s10, 0
    %p121 = por %p119, %p120
    %p122 = scmp.ne.s32.totalorder %s111, %s114
    %p123 = scmp.eq.s32.totalorder %s15, 1
    %p124 = por %p122, %p123
    %p125 = scmp.ne.s32.totalorder %s114, %s115
    %p126 = scmp.eq.s32.totalorder %s15, 0
    %p127 = por %p125, %p126
    %p128 = scmp.ne.s32.totalorder %s114, %s115
    %p129 = scmp.eq.s32.totalorder %s16, 1
    %p130 = por %p128, %p129
    %p132 = scmp.ne.s32.totalorder %s115, %s131
    %p133 = scmp.eq.s32.totalorder %s16, 0
    %p134 = por %p132, %p133
    %p135 = scmp.le.s32.totalorder 1, %s10
    %p136 = scmp.lt.s32.totalorder %s10, 3
    %p137 = pnand %p135, %p136
    %p138 = pneg %p137
    // Predicated region
    $region9: #{conv_block_forward.2} parent=5 // pred_check
      _
    $region10: #{conv_block_forward.2} parent=5 // pred_check_branch
      %140 = sbr.rel (%p137) target = $region12
    $region11: #{conv_block_forward.2} parent=5 // pred_region
      %s141 = ssub.s32 %s10, 1
      // Predicated region
      $region13: #{conv_block_forward.2} parent=11 // pred_check
        %p142 = pneg %p43
      $region14: #{conv_block_forward.2} parent=11 // pred_check_branch
        %144 = sbr.rel (%p142) target = $region16
      $region15: #{conv_block_forward.2} parent=11 // pred_region
        _
      $region16: #{conv_block_forward.2} parent=11 // pred_fallthru
        _
    $region12: #{conv_block_forward.2} parent=5 // pred_fallthru
      _
    %p145 = scmp.lt.s32.totalorder %s10, 2
    // Predicated region
    $region17: #{conv_block_forward.2} parent=5 // pred_check
      %p146 = pneg %p145
    $region18: #{conv_block_forward.2} parent=5 // pred_check_branch
      %148 = sbr.rel (%p146) target = $region20
    $region19: #{conv_block_forward.2} parent=5 // pred_region
      // Predicated region
      $region21: #{conv_block_forward.2} parent=19 // pred_check
        %p149 = pneg %p65
      $region22: #{conv_block_forward.2} parent=19 // pred_check_branch
        %151 = sbr.rel (%p149) target = $region24
      $region23: #{conv_block_forward.2} parent=19 // pred_region
        %s152 = smul.u32 2, %s18
        %p153 = scmp.lt.s32.totalorder %s17, 1
        %s154 = scalar_select %p153, %s17, 1
        %p155 = scmp.lt.s32.totalorder %s152, 1
        %s156 = scalar_select %p155, %s152, 1
        %s157 = smul.addr %s154, 10
        %s158 = sadd.s32 %s156, %s157
        %s159 = smul.addr %s158, 4
        %s160 = scalar_lea.vmem %s1, %s159
        %s161 = smul.u32 2, %s18
      $region24: #{conv_block_forward.2} parent=19 // pred_fallthru
        _
    $region20: #{conv_block_forward.2} parent=5 // pred_fallthru
      _
    %p162 = scmp.le.s32.totalorder 1, %s10
    %p163 = scmp.lt.s32.totalorder %s10, 3
    %p164 = pnand %p162, %p163
    %p165 = pneg %p164
    // Predicated region
    $region25: #{conv_block_forward.2} parent=5 // pred_check
      _
    $region26: #{conv_block_forward.2} parent=5 // pred_check_branch
      %167 = sbr.rel (%p164) target = $region28
    $region27: #{conv_block_forward.2} parent=5 // pred_region
      %s168 = ssub.s32 %s10, 1
      %p169 = pneg %p43
      %p170 = pneg %p40
      %s171 = smul.u32 2, %s20
      %p172 = scmp.lt.s32.totalorder %s19, 1
      %s173 = scalar_select %p172, %s19, 1
      %p174 = scmp.lt.s32.totalorder %s171, 1
      %s175 = scalar_select %p174, %s171, 1
      %s176 = smul.addr %s173, 10
      %s177 = sadd.s32 %s175, %s176
      %s178 = smul.addr %s177, 4
      %s179 = scalar_lea.vmem %s1, %s178
      %p180 = pneg %p71
      %p181 = pneg %p68
      %p182 = pneg %p99
      %p183 = pneg %p96
      %p184 = scmp.lt.s32.totalorder %s19, 1
      %s185 = scalar_select %p184, %s19, 1
      %p186 = scmp.lt.s32.totalorder %s20, 0
      %s187 = scalar_select %p186, %s20, 0
      %s188 = sadd.s32 %s187, %s185
      %s189 = smul.addr %s188, 8
      %s190 = scalar_lea.vmem %s2, %s189
      %p191 = pneg %p127
      %p192 = pneg %p124
      %p193 = scmp.lt.s32.totalorder %s19, 1
      %s194 = scalar_select %p193, %s19, 1
      %p195 = scmp.lt.s32.totalorder %s20, 0
      %s196 = scalar_select %p195, %s20, 0
      %s197 = sadd.s32 %s196, %s194
      %s198 = smul.addr %s197, 8
      %s199 = scalar_lea.vmem %s3, %s198
      %s200 = smul.u32 2, %s20
      %p201 = scmp.lt.s32.totalorder %s19, 1
      %s202 = scalar_select %p201, %s19, 1
      %p203 = scmp.lt.s32.totalorder %s200, 1
      %s204 = scalar_select %p203, %s200, 1
      %s205 = smul.addr %s202, 10
      %s206 = sadd.s32 %s204, %s205
      %s207 = smul.addr %s206, 4
      %s208 = scalar_lea.vmem %s1, %s207
      %s209 = smul.u32 2, %s20
      %p210 = scmp.lt.s32.totalorder %s19, 1
      %s211 = scalar_select %p210, %s19, 1
      %p212 = scmp.lt.s32.totalorder %s20, 0
      %s213 = scalar_select %p212, %s20, 0
      %s214 = sadd.s32 %s213, %s211
      %s215 = smul.addr %s214, 8
      %s216 = scalar_lea.vmem %s2, %s215
      %p217 = scmp.lt.s32.totalorder %s19, 1
      %s218 = scalar_select %p217, %s19, 1
      %p219 = scmp.lt.s32.totalorder %s20, 0
      %s220 = scalar_select %p219, %s20, 0
      %s221 = sadd.s32 %s220, %s218
      %s222 = smul.addr %s221, 8
      %s223 = scalar_lea.vmem %s3, %s222
      %v225 = vld [vmem:[%s0] sm:$0xf]
      %v226 = vld [vmem:[%s208] sm:$0xff]
      %v227 = vld [vmem:[%s208 + $0x8] sm:$0xff]
      %v228 = vld [vmem:[%s208 + $0x10] sm:$0xff]
      %v229 = vld [vmem:[%s208 + $0x18] sm:$0xff]
      %v230 = vld [vmem:[%s208 + $0x20] sm:$0x33]
      %v236 = vunpack.c.l.b16 %v226
      %v237 = vunpack.c.h.b16 %v226
      %v238 = vunpack.c.l.b16 %v227
      %v239 = vunpack.c.h.b16 %v227
      %v240 = vunpack.c.l.b16 %v228
      %v241 = vunpack.c.h.b16 %v228
      %v242 = vunpack.c.l.b16 %v229
      %v243 = vunpack.c.h.b16 %v229
      %v244 = vunpack.c.l.b16 %v230
      %v245 = vunpack.c.h.b16 %v230
      %v246 = vpack.c.b16 %v238, %v236
      %v247 = vpack.c.b16 %v239, %v237
      %v248 = vpack.c.b16 %v242, %v240
      %v249 = vpack.c.b16 %v243, %v241
      %v250 = vpack.c.b16 %v244, %v244
      %v251 = vpack.c.b16 %v245, %v245
      %vm256 = vcmask 293888
      %v258 = vsel %vm256, %v225, 0
      %vm260 = vcmask 1041408
      %v262 = vsel %vm260, %v250, 0
      %v265 = vsel %vm260, %v251, 0
      %267 = vmatpush.bf16.msra.mxu0 0
      %268 = vmatpush.bf16.msra.mxu0 0
      %269 = vmatpush.bf16.msra.mxu0 0
      %270 = vmatpush.bf16.msra.mxu0 0
      %271 = vmatpush.bf16.msra.mxu0 0
      %272 = vmatpush.bf16.msra.mxu0 %v262
      %273 = vmatpush.bf16.msra.mxu0 %v248
      %274 = vmatpush.bf16.msra.mxu0 %v246
      %275 = vmatmul.bf16.gmra.mxu0 %v258
      %v276 = vpop.f32.mrf.mxu0
      %v277 = vadd.f32 0.0, %v276
      %v278 = vpop.f32.mrf.mxu0
      %279 = vdwg.mxu0
      %280 = vmatpush.bf16.msra.mxu0 0
      %281 = vmatpush.bf16.msra.mxu0 0
      %282 = vmatpush.bf16.msra.mxu0 0
      %283 = vmatpush.bf16.msra.mxu0 0
      %284 = vmatpush.bf16.msra.mxu0 0
      %285 = vmatpush.bf16.msra.mxu0 %v265
      %286 = vmatpush.bf16.msra.mxu0 %v249
      %287 = vmatpush.bf16.msra.mxu0 %v247
      %288 = vmatmul.bf16.gmra.mxu0 %v258
      %v289 = vpop.f32.mrf.mxu0
      %v290 = vadd.f32 0.0, %v289
      %v291 = vpop.f32.mrf.mxu0
      %292 = vdwg.mxu0
      %v293 = vadd.f32 %v277, %v290
      %294 = vadd.xlane.f32.xlu0 %v293
      %v295 = vpop.xlane.xlu0 %294
      %vm296 = vcmask 7168
      %297 = vst.msk [vmem:[%s216] sm:$0xff] %vm296, %v295
      %v298 = vmul.f32 %v277, %v277
      %v299 = vmul.f32 %v290, %v290
      %v300 = vadd.f32 %v298, %v299
      %301 = vadd.xlane.f32.xlu0 %v300
      %v302 = vpop.xlane.xlu0 %301
      %303 = vst.msk [vmem:[%s223] sm:$0xff] %vm296, %v302
      %p304 = scmp.lt.s32.totalorder %s19, 1
      %s305 = scalar_select %p304, %s19, 1
      %p306 = scmp.lt.s32.totalorder %s20, 0
      %s307 = scalar_select %p306, %s20, 0
      %s308 = sadd.s32 %s307, %s305
      %s309 = smul.addr %s308, 8
      %s310 = scalar_lea.vmem %s2, %s309
      %p311 = scmp.lt.s32.totalorder %s19, 1
      %s312 = scalar_select %p311, %s19, 1
      %p313 = scmp.lt.s32.totalorder %s20, 0
      %s314 = scalar_select %p313, %s20, 0
      %s315 = sadd.s32 %s314, %s312
      %s316 = smul.addr %s315, 8
      %s317 = scalar_lea.vmem %s3, %s316
      // Predicated region
      $region29: #{conv_block_forward.2} parent=27 // pred_check
        %p318 = pneg %p96
      $region30: #{conv_block_forward.2} parent=27 // pred_check_branch
        %320 = sbr.rel (%p318) target = $region32
      $region31: #{conv_block_forward.2} parent=27 // pred_region
        _
      $region32: #{conv_block_forward.2} parent=27 // pred_fallthru
        _
      // Predicated region
      $region33: #{conv_block_forward.2} parent=27 // pred_check
        %p321 = pneg %p124
      $region34: #{conv_block_forward.2} parent=27 // pred_check_branch
        %323 = sbr.rel (%p321) target = $region36
      $region35: #{conv_block_forward.2} parent=27 // pred_region
        _
      $region36: #{conv_block_forward.2} parent=27 // pred_fallthru
        _
    $region28: #{conv_block_forward.2} parent=5 // pred_fallthru
      _
    %p324 = scmp.le.s32.totalorder 2, %s10
    // Predicated region
    $region37: #{conv_block_forward.2} parent=5 // pred_check
      %p325 = pneg %p324
    $region38: #{conv_block_forward.2} parent=5 // pred_check_branch
      %327 = sbr.rel (%p325) target = $region40
    $region39: #{conv_block_forward.2} parent=5 // pred_region
      %s328 = ssub.s32 %s10, 2
      // Predicated region
      $region41: #{conv_block_forward.2} parent=39 // pred_check
        %p329 = pneg %p102
      $region42: #{conv_block_forward.2} parent=39 // pred_check_branch
        %331 = sbr.rel (%p329) target = $region44
      $region43: #{conv_block_forward.2} parent=39 // pred_region
        %p332 = scmp.lt.s32.totalorder %s21, 1
        %s333 = scalar_select %p332, %s21, 1
        %p334 = scmp.lt.s32.totalorder %s22, 0
        %s335 = scalar_select %p334, %s22, 0
        %s336 = sadd.s32 %s335, %s333
        %s337 = smul.addr %s336, 8
        %s338 = scalar_lea.vmem %s2, %s337
      $region44: #{conv_block_forward.2} parent=39 // pred_fallthru
        _
      // Predicated region
      $region45: #{conv_block_forward.2} parent=39 // pred_check
        %p339 = pneg %p130
      $region46: #{conv_block_forward.2} parent=39 // pred_check_branch
        %341 = sbr.rel (%p339) target = $region48
      $region47: #{conv_block_forward.2} parent=39 // pred_region
        %p342 = scmp.lt.s32.totalorder %s21, 1
        %s343 = scalar_select %p342, %s21, 1
        %p344 = scmp.lt.s32.totalorder %s22, 0
        %s345 = scalar_select %p344, %s22, 0
        %s346 = sadd.s32 %s345, %s343
        %s347 = smul.addr %s346, 8
        %s348 = scalar_lea.vmem %s3, %s347
      $region48: #{conv_block_forward.2} parent=39 // pred_fallthru
        _
    $region40: #{conv_block_forward.2} parent=5 // pred_fallthru
      _
  $region6: #{conv_block_forward.2} parent=0 // loop_footer
    %s14 = sadd.s32 1, %s10
  $region7: #{conv_block_forward.2} parent=0 // loop_footer_branch
    %9 = sbr.rel target = $region3
  $region8: #{conv_block_forward.2} parent=0 // loop_exit
    _

// kernel: conv_block_forward.3
$region0: #{conv_block_forward.3}
  #allocation0 [shape = 'u32[]', space=smem, size = 0x4, offset = 0x4, fixed_abs, tag = 'smem constant byte address 0x4 - core index']
  #allocation1 [shape = 'u32[72,128]{1,0:T(1,128)}', space=vmem, size = 0x9000, scoped, tag = 'internal scratch']
  %s0 = inlined_call_operand.vmem [shape: bf16[8,36], index: 0, kind: input, shape index: {}]
  %s1 = inlined_call_operand.vmem [shape: bf16[2,36,256], index: 1, kind: input, shape index: {}]
  %s2 = inlined_call_operand.vmem [shape: f32[8,1], index: 2, kind: input, shape index: {}]
  %s3 = inlined_call_operand.vmem [shape: f32[8,1], index: 3, kind: input, shape index: {}]
  %s4 = inlined_call_operand.vmem [shape: f32[2,8,256], index: 4, kind: output, shape index: {}]
  %s5 = sld [smem:[#allocation0]]
  $region49: #{conv_block_forward.3} parent=0
    _
  %s7 = ssub.s32 1, %s5
  %s8 = scalar_select 0, %s7, %s5
  loop: start=0, step=1, limit=4
  $region2: #{conv_block_forward.3} parent=0 // loop_pre_header
    _
  $region3: #{conv_block_forward.3} parent=0 // loop_header
    %s10 = sphi 0, %s14
    %p11 = scmp.ge.s32.totalorder %s10, 4
    %s17 = sphi 0, %s29
    %s18 = sphi 0, %s25
    %s19 = sphi 0, %s17
    %s20 = sphi 0, %s18
    %s21 = sphi 0, %s19
    %s22 = sphi 0, %s20
    %s30 = sphi 0, %s30
    %s32 = sphi 0, %s30
    %s33 = sphi 0, %s32
    %s47 = sphi 0, %s33
    %s55 = sphi 0, %s57
    %s58 = sphi 0, %s55
    %s59 = sphi 0, %s58
    %s75 = sphi 0, %s59
    %s79 = sphi 0, %s79
    %s81 = sphi 0, %s79
    %s82 = sphi 0, %s81
    %s96 = sphi 0, %s82
    %s100 = sphi 0, %s100
    %s102 = sphi 0, %s100
    %s103 = sphi 0, %s102
    %s117 = sphi 0, %s103
    %s125 = sphi 0, %s127
    %s128 = sphi 0, %s125
    %s129 = sphi 0, %s128
    %s145 = sphi 0, %s129
  $region4: #{conv_block_forward.3} parent=0 // loop_header_branch
    %13 = sbr.rel (%p11) target = $region8
  $region5: #{conv_block_forward.3} parent=0 // loop_body
    %s15 = ssub.s32 %s10, 1
    %s16 = ssub.s32 %s10, 2
    %s23 = sadd.s32 1, %s18
    %p24 = scmp.ge.s32.totalorder %s23, 1
    %s25 = scalar_select %p24, 0, %s23
    %s26 = sadd.s32 1, %s17
    %s27 = scalar_select %p24, %s26, %s17
    %p28 = scmp.ge.s32.totalorder %s27, 2
    %s29 = scalar_select %p28, 0, %s27
    %s31 = sadd.s32 %s30, 1
    %p34 = scmp.eq.s32.totalorder %s10, 1
    %p35 = scmp.ne.s32.totalorder %s30, %s32
    %p36 = scmp.eq.s32.totalorder %s10, 0
    %p37 = por %p35, %p36
    %p38 = scmp.ne.s32.totalorder %s30, %s32
    %p39 = scmp.eq.s32.totalorder %s15, 1
    %p40 = por %p38, %p39
    %p41 = scmp.ne.s32.totalorder %s32, %s33
    %p42 = scmp.eq.s32.totalorder %s15, 0
    %p43 = por %p41, %p42
    %p44 = scmp.ne.s32.totalorder %s32, %s33
    %p45 = scmp.eq.s32.totalorder %s16, 1
    %p46 = por %p44, %p45
    %p48 = scmp.ne.s32.totalorder %s33, %s47
    %p49 = scmp.eq.s32.totalorder %s16, 0
    %p50 = por %p48, %p49
    %s51 = ssub.s32 %s17, %s29
    %s52 = ssub.s32 %s18, %s25
    %s53 = sor.u32 %s51, %s52
    %p54 = scmp.eq.s32.totalorder %s53, 0
    %s56 = sadd.s32 %s55, 1
    %s57 = scalar_select %p54, %s55, %s56
    %p60 = pneg %p54
    %p61 = scmp.eq.s32.totalorder %s10, 1
    %p62 = por %p60, %p61
    %p63 = scmp.ne.s32.totalorder %s55, %s58
    %p64 = scmp.eq.s32.totalorder %s10, 0
    %p65 = por %p63, %p64
    %p66 = scmp.ne.s32.totalorder %s55, %s58
    %p67 = scmp.eq.s32.totalorder %s15, 1
    %p68 = por %p66, %p67
    %p69 = scmp.ne.s32.totalorder %s58, %s59
    %p70 = scmp.eq.s32.totalorder %s15, 0
    %p71 = por %p69, %p70
    %p72 = scmp.ne.s32.totalorder %s58, %s59
    %p73 = scmp.eq.s32.totalorder %s16, 1
    %p74 = por %p72, %p73
    %p76 = scmp.ne.s32.totalorder %s59, %s75
    %p77 = scmp.eq.s32.totalorder %s16, 0
    %p78 = por %p76, %p77
    %s80 = sadd.s32 %s79, 1
    %p83 = scmp.eq.s32.totalorder %s10, 1
    %p84 = scmp.ne.s32.totalorder %s79, %s81
    %p85 = scmp.eq.s32.totalorder %s10, 0
    %p86 = por %p84, %p85
    %p87 = scmp.ne.s32.totalorder %s79, %s81
    %p88 = scmp.eq.s32.totalorder %s15, 1
    %p89 = por %p87, %p88
    %p90 = scmp.ne.s32.totalorder %s81, %s82
    %p91 = scmp.eq.s32.totalorder %s15, 0
    %p92 = por %p90, %p91
    %p93 = scmp.ne.s32.totalorder %s81, %s82
    %p94 = scmp.eq.s32.totalorder %s16, 1
    %p95 = por %p93, %p94
    %p97 = scmp.ne.s32.totalorder %s82, %s96
    %p98 = scmp.eq.s32.totalorder %s16, 0
    %p99 = por %p97, %p98
    %s101 = sadd.s32 %s100, 1
    %p104 = scmp.eq.s32.totalorder %s10, 1
    %p105 = scmp.ne.s32.totalorder %s100, %s102
    %p106 = scmp.eq.s32.totalorder %s10, 0
    %p107 = por %p105, %p106
    %p108 = scmp.ne.s32.totalorder %s100, %s102
    %p109 = scmp.eq.s32.totalorder %s15, 1
    %p110 = por %p108, %p109
    %p111 = scmp.ne.s32.totalorder %s102, %s103
    %p112 = scmp.eq.s32.totalorder %s15, 0
    %p113 = por %p111, %p112
    %p114 = scmp.ne.s32.totalorder %s102, %s103
    %p115 = scmp.eq.s32.totalorder %s16, 1
    %p116 = por %p114, %p115
    %p118 = scmp.ne.s32.totalorder %s103, %s117
    %p119 = scmp.eq.s32.totalorder %s16, 0
    %p120 = por %p118, %p119
    %s121 = ssub.s32 %s17, %s29
    %s122 = ssub.s32 %s18, %s25
    %s123 = sor.u32 %s121, %s122
    %p124 = scmp.eq.s32.totalorder %s123, 0
    %s126 = sadd.s32 %s125, 1
    %s127 = scalar_select %p124, %s125, %s126
    %p130 = pneg %p124
    %p131 = scmp.eq.s32.totalorder %s10, 1
    %p132 = por %p130, %p131
    %p133 = scmp.ne.s32.totalorder %s125, %s128
    %p134 = scmp.eq.s32.totalorder %s10, 0
    %p135 = por %p133, %p134
    %p136 = scmp.ne.s32.totalorder %s125, %s128
    %p137 = scmp.eq.s32.totalorder %s15, 1
    %p138 = por %p136, %p137
    %p139 = scmp.ne.s32.totalorder %s128, %s129
    %p140 = scmp.eq.s32.totalorder %s15, 0
    %p141 = por %p139, %p140
    %p142 = scmp.ne.s32.totalorder %s128, %s129
    %p143 = scmp.eq.s32.totalorder %s16, 1
    %p144 = por %p142, %p143
    %p146 = scmp.ne.s32.totalorder %s129, %s145
    %p147 = scmp.eq.s32.totalorder %s16, 0
    %p148 = por %p146, %p147
    %p149 = scmp.le.s32.totalorder 1, %s10
    %p150 = scmp.lt.s32.totalorder %s10, 3
    %p151 = pnand %p149, %p150
    %p152 = pneg %p151
    // Predicated region
    $region9: #{conv_block_forward.3} parent=5 // pred_check
      _
    $region10: #{conv_block_forward.3} parent=5 // pred_check_branch
      %154 = sbr.rel (%p151) target = $region12
    $region11: #{conv_block_forward.3} parent=5 // pred_region
      %s155 = ssub.s32 %s10, 1
      // Predicated region
      $region13: #{conv_block_forward.3} parent=11 // pred_check
        %p156 = pneg %p43
      $region14: #{conv_block_forward.3} parent=11 // pred_check_branch
        %158 = sbr.rel (%p156) target = $region16
      $region15: #{conv_block_forward.3} parent=11 // pred_region
        _
      $region16: #{conv_block_forward.3} parent=11 // pred_fallthru
        _
      // Predicated region
      $region17: #{conv_block_forward.3} parent=11 // pred_check
        %p159 = pneg %p92
      $region18: #{conv_block_forward.3} parent=11 // pred_check_branch
        %161 = sbr.rel (%p159) target = $region20
      $region19: #{conv_block_forward.3} parent=11 // pred_region
        _
      $region20: #{conv_block_forward.3} parent=11 // pred_fallthru
        _
      // Predicated region
      $region21: #{conv_block_forward.3} parent=11 // pred_check
        %p162 = pneg %p113
      $region22: #{conv_block_forward.3} parent=11 // pred_check_branch
        %164 = sbr.rel (%p162) target = $region24
      $region23: #{conv_block_forward.3} parent=11 // pred_region
        _
      $region24: #{conv_block_forward.3} parent=11 // pred_fallthru
        _
    $region12: #{conv_block_forward.3} parent=5 // pred_fallthru
      _
    %p165 = scmp.lt.s32.totalorder %s10, 2
    // Predicated region
    $region25: #{conv_block_forward.3} parent=5 // pred_check
      %p166 = pneg %p165
    $region26: #{conv_block_forward.3} parent=5 // pred_check_branch
      %168 = sbr.rel (%p166) target = $region28
    $region27: #{conv_block_forward.3} parent=5 // pred_region
      // Predicated region
      $region29: #{conv_block_forward.3} parent=27 // pred_check
        %p169 = pneg %p65
      $region30: #{conv_block_forward.3} parent=27 // pred_check_branch
        %171 = sbr.rel (%p169) target = $region32
      $region31: #{conv_block_forward.3} parent=27 // pred_region
        %s172 = smul.u32 2, %s18
        %p173 = scmp.lt.s32.totalorder %s17, 1
        %s174 = scalar_select %p173, %s17, 1
        %p175 = scmp.lt.s32.totalorder %s172, 1
        %s176 = scalar_select %p175, %s172, 1
        %s177 = smul.addr %s174, 10
        %s178 = sadd.s32 %s176, %s177
        %s179 = smul.addr %s178, 4
        %s180 = scalar_lea.vmem %s1, %s179
        %s181 = smul.u32 2, %s18
      $region32: #{conv_block_forward.3} parent=27 // pred_fallthru
        _
    $region28: #{conv_block_forward.3} parent=5 // pred_fallthru
      _
    %p182 = scmp.le.s32.totalorder 1, %s10
    %p183 = scmp.lt.s32.totalorder %s10, 3
    %p184 = pnand %p182, %p183
    %p185 = pneg %p184
    // Predicated region
    $region33: #{conv_block_forward.3} parent=5 // pred_check
      _
    $region34: #{conv_block_forward.3} parent=5 // pred_check_branch
      %187 = sbr.rel (%p184) target = $region36
    $region35: #{conv_block_forward.3} parent=5 // pred_region
      %s188 = ssub.s32 %s10, 1
      %p189 = pneg %p43
      %p190 = pneg %p40
      %s191 = smul.u32 2, %s20
      %p192 = scmp.lt.s32.totalorder %s19, 1
      %s193 = scalar_select %p192, %s19, 1
      %p194 = scmp.lt.s32.totalorder %s191, 1
      %s195 = scalar_select %p194, %s191, 1
      %s196 = smul.addr %s193, 10
      %s197 = sadd.s32 %s195, %s196
      %s198 = smul.addr %s197, 4
      %s199 = scalar_lea.vmem %s1, %s198
      %p200 = pneg %p71
      %p201 = pneg %p68
      %p202 = pneg %p92
      %p203 = pneg %p89
      %p204 = pneg %p113
      %p205 = pneg %p110
      %p206 = pneg %p141
      %p207 = pneg %p138
      %s208 = smul.u32 2, %s20
      %p209 = scmp.lt.s32.totalorder %s19, 1
      %s210 = scalar_select %p209, %s19, 1
      %p211 = scmp.lt.s32.totalorder %s208, 1
      %s212 = scalar_select %p211, %s208, 1
      %s213 = smul.addr %s210, 2
      %s214 = sadd.s32 %s212, %s213
      %s215 = smul.addr %s214, 8
      %s216 = scalar_lea.vmem %s4, %s215
      %s217 = smul.u32 2, %s20
      %p218 = scmp.lt.s32.totalorder %s19, 1
      %s219 = scalar_select %p218, %s19, 1
      %p220 = scmp.lt.s32.totalorder %s217, 1
      %s221 = scalar_select %p220, %s217, 1
      %s222 = smul.addr %s219, 10
      %s223 = sadd.s32 %s221, %s222
      %s224 = smul.addr %s223, 4
      %s225 = scalar_lea.vmem %s1, %s224
      %s226 = smul.u32 2, %s20
      %s227 = smul.u32 2, %s20
      %p228 = scmp.lt.s32.totalorder %s19, 1
      %s229 = scalar_select %p228, %s19, 1
      %p230 = scmp.lt.s32.totalorder %s227, 1
      %s231 = scalar_select %p230, %s227, 1
      %s232 = smul.addr %s229, 2
      %s233 = sadd.s32 %s231, %s232
      %s234 = smul.addr %s233, 8
      %s235 = scalar_lea.vmem %s4, %s234
      %s236 = smul.u32 2, %s20
      %v238 = vld [vmem:[%s0] sm:$0xf]
      %v239 = vld [vmem:[%s225] sm:$0xff]
      %v240 = vld [vmem:[%s225 + $0x8] sm:$0xff]
      %v241 = vld [vmem:[%s225 + $0x10] sm:$0xff]
      %v242 = vld [vmem:[%s225 + $0x18] sm:$0xff]
      %v243 = vld [vmem:[%s225 + $0x20] sm:$0x33]
      %v249 = vunpack.c.l.b16 %v239
      %v250 = vunpack.c.h.b16 %v239
      %v251 = vunpack.c.l.b16 %v240
      %v252 = vunpack.c.h.b16 %v240
      %v253 = vunpack.c.l.b16 %v241
      %v254 = vunpack.c.h.b16 %v241
      %v255 = vunpack.c.l.b16 %v242
      %v256 = vunpack.c.h.b16 %v242
      %v257 = vunpack.c.l.b16 %v243
      %v258 = vunpack.c.h.b16 %v243
      %v259 = vpack.c.b16 %v251, %v249
      %v260 = vpack.c.b16 %v252, %v250
      %v261 = vpack.c.b16 %v255, %v253
      %v262 = vpack.c.b16 %v256, %v254
      %v263 = vpack.c.b16 %v257, %v257
      %v264 = vpack.c.b16 %v258, %v258
      %vm269 = vcmask 293888
      %v271 = vsel %vm269, %v238, 0
      %vm273 = vcmask 1041408
      %v275 = vsel %vm273, %v263, 0
      %v278 = vsel %vm273, %v264, 0
      %280 = vmatpush.bf16.msra.mxu0 0
      %281 = vmatpush.bf16.msra.mxu0 0
      %282 = vmatpush.bf16.msra.mxu0 0
      %283 = vmatpush.bf16.msra.mxu0 0
      %284 = vmatpush.bf16.msra.mxu0 0
      %285 = vmatpush.bf16.msra.mxu0 %v275
      %286 = vmatpush.bf16.msra.mxu0 %v261
      %287 = vmatpush.bf16.msra.mxu0 %v259
      %288 = vmatmul.bf16.gmra.mxu0 %v271
      %v289 = vpop.f32.mrf.mxu0
      %v290 = vadd.f32 0.0, %v289
      %v291 = vpop.f32.mrf.mxu0
      %292 = vdwg.mxu0
      %293 = vmatpush.bf16.msra.mxu0 0
      %294 = vmatpush.bf16.msra.mxu0 0
      %295 = vmatpush.bf16.msra.mxu0 0
      %296 = vmatpush.bf16.msra.mxu0 0
      %297 = vmatpush.bf16.msra.mxu0 0
      %298 = vmatpush.bf16.msra.mxu0 %v278
      %299 = vmatpush.bf16.msra.mxu0 %v262
      %300 = vmatpush.bf16.msra.mxu0 %v260
      %301 = vmatmul.bf16.gmra.mxu0 %v271
      %v302 = vpop.f32.mrf.mxu0
      %v303 = vadd.f32 0.0, %v302
      %v304 = vpop.f32.mrf.mxu0
      %305 = vdwg.mxu0
      %v306 = vld [vmem:[%s2] sm:$0xff]
      %308 = vset.pattern.permute.xlu0 0
      %309 = vperm.xlu0 %308, %v306
      %v310 = vpop.permute.xlu0 %309
      %v312 = vmul.f32 %v290, %v310
      %v313 = vmul.f32 %v303, %v310
      %v314 = vld [vmem:[%s3] sm:$0xff]
      %316 = vset.pattern.permute.xlu0 0
      %317 = vperm.xlu0 %316, %v314
      %v318 = vpop.permute.xlu0 %317
      %v320 = vadd.f32 %v312, %v318
      %v321 = vadd.f32 %v313, %v318
      %v322 = vmax.f32 %v320, 0.0
      %v323 = vmax.f32 %v321, 0.0
      %324 = vst [vmem:[%s235] sm:$0xff] %v322
      %325 = vst [vmem:[%s235 + $0x8] sm:$0xff] %v323
      %s326 = smul.u32 2, %s20
      %p327 = scmp.lt.s32.totalorder %s19, 1
      %s328 = scalar_select %p327, %s19, 1
      %p329 = scmp.lt.s32.totalorder %s326, 1
      %s330 = scalar_select %p329, %s326, 1
      %s331 = smul.addr %s328, 2
      %s332 = sadd.s32 %s330, %s331
      %s333 = smul.addr %s332, 8
      %s334 = scalar_lea.vmem %s4, %s333
      // Predicated region
      $region37: #{conv_block_forward.3} parent=35 // pred_check
        %p335 = pneg %p138
      $region38: #{conv_block_forward.3} parent=35 // pred_check_branch
        %337 = sbr.rel (%p335) target = $region40
      $region39: #{conv_block_forward.3} parent=35 // pred_region
        %s338 = smul.u32 2, %s20
      $region40: #{conv_block_forward.3} parent=35 // pred_fallthru
        _
    $region36: #{conv_block_forward.3} parent=5 // pred_fallthru
      _
    %p339 = scmp.le.s32.totalorder 2, %s10
    // Predicated region
    $region41: #{conv_block_forward.3} parent=5 // pred_check
      %p340 = pneg %p339
    $region42: #{conv_block_forward.3} parent=5 // pred_check_branch
      %342 = sbr.rel (%p340) target = $region44
    $region43: #{conv_block_forward.3} parent=5 // pred_region
      %s343 = ssub.s32 %s10, 2
      // Predicated region
      $region45: #{conv_block_forward.3} parent=43 // pred_check
        %p344 = pneg %p144
      $region46: #{conv_block_forward.3} parent=43 // pred_check_branch
        %346 = sbr.rel (%p344) target = $region48
      $region47: #{conv_block_forward.3} parent=43 // pred_region
        %s347 = smul.u32 2, %s22
        %p348 = scmp.lt.s32.totalorder %s21, 1
        %s349 = scalar_select %p348, %s21, 1
        %p350 = scmp.lt.s32.totalorder %s347, 1
        %s351 = scalar_select %p350, %s347, 1
        %s352 = smul.addr %s349, 2
        %s353 = sadd.s32 %s351, %s352
        %s354 = smul.addr %s353, 8
        %s355 = scalar_lea.vmem %s4, %s354
      $region48: #{conv_block_forward.3} parent=43 // pred_fallthru
        _
    $region44: #{conv_block_forward.3} parent=5 // pred_fallthru
      _
  $region6: #{conv_block_forward.3} parent=0 // loop_footer
    %s14 = sadd.s32 1, %s10
  $region7: #{conv_block_forward.3} parent=0 // loop_footer_branch
    %9 = sbr.rel target = $region3
  $region8: #{conv_block_forward.3} parent=0 // loop_exit
    _

</llo_original>
